<compile_context>
chip_gen: v7x
topology: tpu7x:2x2x1
jax: 0.10.0
libtpu: 0.0.40
codegen_flags: <defaults>
</compile_context>

<pallas_src>
import functools

import numpy as np
import jax
import jax.numpy as jnp
from jax.experimental import pallas as pl
from jax.experimental.pallas import tpu as pltpu

_LANE = 128
_SUBLANE = 8
_MAX_ROW_TILE = 4096          # 4096 * 128 * 4 B = 2 MiB per block buffer

# 32-bit hash constants written as their signed-int32 values.
_PHI32 = -1640531527          # 0x9E3779B9
_M1 = -2048144789             # 0x85EBCA6B
_M2 = -1028477387             # 0xC2B2AE35


def _srl(x, k):
    """Logical right shift for int32 (jnp >> is arithmetic; mask fixes it)."""
    return (x >> k) & jnp.int32((1 << (32 - k)) - 1)


def _hash32(ctr, seed):
    """Counter-based PRNG: golden-ratio spread + murmur3 fmix32 finalizer.

    Pure int32 jnp ops (mul/add/xor/shift/and), so it lowers both on the
    Mosaic TPU backend and in interpret mode.
    """
    h = ctr * jnp.int32(_PHI32)                       # spread consecutive counters
    h = h ^ (seed * jnp.int32(_M2) + jnp.int32(_PHI32))   # fold the user seed in
    h = h ^ _srl(h, 16)
    h = h * jnp.int32(_M1)
    h = h ^ _srl(h, 13)
    h = h * jnp.int32(_M2)
    h = h ^ _srl(h, 16)
    return h


def _ndtri(p):
    """Acklam's rational approximation of the inverse normal CDF.

    Both branch polynomials are evaluated (cheap VALU work), then numerator
    and denominator are selected and a SINGLE division is performed.  Only
    log/sqrt/div/mul/add/select are used (VPU/EUP friendly).
    """
    a1, a2, a3 = -3.969683028665376e+01, 2.209460984245205e+02, -2.759285104469687e+02
    a4, a5, a6 = 1.383577518672690e+02, -3.066479806614716e+01, 2.506628277459239e+00
    b1, b2, b3 = -5.447609879822406e+01, 1.615858368580409e+02, -1.556989798598866e+02
    b4, b5 = 6.680131188771972e+01, -1.328068155288572e+01
    c1, c2, c3 = -7.784894002430293e-03, -3.223964580411365e-01, -2.400758277161838e+00
    c4, c5, c6 = -2.549732539343734e+00, 4.374664141464968e+00, 2.938163982698783e+00
    d1, d2 = 7.784695709041462e-03, 3.224671290700398e-01
    d3, d4 = 2.445134137142996e+00, 3.754408661907416e+00
    p_low = 0.02425

    # Central region.
    q = p - 0.5
    r = q * q
    num_c = (((((a1 * r + a2) * r + a3) * r + a4) * r + a5) * r + a6) * q
    den_c = ((((b1 * r + b2) * r + b3) * r + b4) * r + b5) * r + 1.0

    # Tails: lower-tail formula on min(p, 1-p); the sign flip for the upper
    # tail is folded into the numerator (den_t > 0 in the tail region).
    pt = jnp.minimum(p, 1.0 - p)
    qt = jnp.sqrt(-2.0 * jnp.log(pt))
    num_t = ((((c1 * qt + c2) * qt + c3) * qt + c4) * qt + c5) * qt + c6
    den_t = (((d1 * qt + d2) * qt + d3) * qt + d4) * qt + 1.0
    num_t = jnp.where(q > 0.0, -num_t, num_t)

    central = jnp.abs(q) <= (0.5 - p_low)
    num = jnp.where(central, num_c, num_t)
    den = jnp.where(central, den_c, den_t)
    return num / den


def _gaussian_noise_kernel(neg_ref, seed_ref, x_ref, o_ref, *, mean, std):
    b_idx = pl.program_id(0)
    r_idx = pl.program_id(1)
    rows, lanes = x_ref.shape

    # Unique int32 counter per element of the whole (padded) batch.
    row_ids = jax.lax.broadcasted_iota(jnp.int32, (rows, lanes), 0)
    lane_ids = jax.lax.broadcasted_iota(jnp.int32, (rows, lanes), 1)
    block_off = (b_idx * pl.num_programs(1) + r_idx) * (rows * lanes)
    ctr = block_off + row_ids * lanes + lane_ids

    # 23 well-mixed random bits -> uniform strictly inside (0, 1) -> normal.
    h = _hash32(ctr, seed_ref[0])
    mant = _srl(h, 9)                                   # top 23 bits
    u = mant.astype(jnp.float32) * jnp.float32(2.0 ** -23) + jnp.float32(2.0 ** -24)
    z = _ndtri(u)

    noise = jnp.float32(std) * z
    if mean != 0.0:                                     # compile-time constant
        noise = noise + jnp.float32(mean)
    noisy = x_ref[...] + noise

    low_clip = jnp.where(neg_ref[b_idx] > 0, jnp.float32(-1.0), jnp.float32(0.0))
    o_ref[...] = jnp.minimum(jnp.maximum(noisy, low_clip), jnp.float32(1.0))


def _pick_row_tile(rows, batch):
    """Largest row tile that divides `rows`, is a multiple of 8 and fits the
    pipeline VMEM budget.  When batch < 2 the image is split into >= 2 blocks
    so both v7x TensorCores get parallel grid work."""
    m = rows // _SUBLANE
    upper = min(m, max(1, _MAX_ROW_TILE // _SUBLANE))
    if batch < 2 and m > 1:
        upper = min(upper, m // 2)
    best = 1
    for t in range(upper, 0, -1):
        if m % t == 0:
            best = t
            break
    return best * _SUBLANE, m // best


def gaussian_noise(x: jax.Array, mean: float = 0.0, var: float = 0.0025,
                   seed: int = 0) -> jax.Array:
    """Pallas equivalent of GaussianNoise.forward. x: (b, c, h, w) -> float32."""
    # TODO(synk): integer image dtypes would need skimage's img_as_float
    # rescaling (e.g. uint8 / 255); float inputs are assumed here.
    b, c, h, w = x.shape
    n = c * h * w

    xf = x.astype(jnp.float32).reshape(b, n)
    neg_flags = (jnp.min(xf, axis=1) < 0.0).astype(jnp.int32)       # (b,)
    seed_arr = jnp.asarray([seed], dtype=jnp.int32)                 # (1,)

    # Lane/sublane-dense layout: every image becomes a (rows, 128) slab with
    # rows a multiple of 8 only (NOT rounded up to the tile size), so there
    # are no extra wrapper pad/slice HBM passes beyond minimal alignment.
    rows = pl.cdiv(n, _LANE)
    rows = ((rows + _SUBLANE - 1) // _SUBLANE) * _SUBLANE
    n_pad = rows * _LANE
    if n_pad != n:
        xf = jnp.pad(xf, ((0, 0), (0, n_pad - n)))
    x3 = xf.reshape(b, rows, _LANE)

    row_tile, n_row_blocks = _pick_row_tile(rows, b)

    kernel = functools.partial(
        _gaussian_noise_kernel, mean=float(mean), std=float(var) ** 0.5)

    elems = b * rows * _LANE
    cost = pl.CostEstimate(
        flops=60 * elems,             # hash + ndtri polynomials + clip
        transcendentals=2 * elems,    # log, sqrt per element
        bytes_accessed=2 * elems * 4 + (b + 1) * 4,
    )

    out3 = pl.pallas_call(
        kernel,
        out_shape=jax.ShapeDtypeStruct((b, rows, _LANE), jnp.float32),
        grid_spec=pltpu.PrefetchScalarGridSpec(
            num_scalar_prefetch=2,
            grid=(b, n_row_blocks),
            in_specs=[
                pl.BlockSpec((None, row_tile, _LANE),
                             lambda i, j, neg, seed: (i, j, 0)),
            ],
            out_specs=pl.BlockSpec((None, row_tile, _LANE),
                                   lambda i, j, neg, seed: (i, j, 0)),
        ),
        compiler_params=pltpu.CompilerParams(
            dimension_semantics=("parallel", "parallel"),
        ),
        cost_estimate=cost,
        input_output_aliases={2: 0},   # reuse x3's HBM buffer for the output
    )(neg_flags, seed_arr, x3)

    out = out3.reshape(b, n_pad)
    if n_pad != n:
        out = out[:, :n]
    return out.reshape(b, c, h, w)


if __name__ == "__main__":
    key = jax.random.PRNGKey(0)
    b, c, h, w = 2, 4, 16, 16
    mean, var = 0.0, 0.0025

    # Inputs contain negatives -> per-image low_clip is -1.0 (skimage rule);
    # range chosen so the [low_clip, 1] clip is essentially never active and
    # the noise statistics can be checked directly.
    x = jax.random.uniform(key, (b, c, h, w), dtype=jnp.float32,
                           minval=-0.5, maxval=0.75)

    out = gaussian_noise(x, mean=mean, var=var, seed=0)
    out = jax.block_until_ready(out)

    assert out.shape == (b, c, h, w)
    assert out.dtype == jnp.float32

    out_np = np.asarray(out)
    x_np = np.asarray(x)

    # Clipped to [low_clip, 1.0].
    assert out_np.max() <= 1.0 + 1e-6
    assert out_np.min() >= -1.0 - 1e-6

    # Statistical sanity check on the injected noise: mean ~ 0, std ~ sqrt(var).
    noise = out_np - x_np
    assert abs(noise.mean() - mean) < 0.01, noise.mean()
    assert abs(noise.std() - var ** 0.5) < 0.01, noise.std()

    # Each image must receive an independent noise realization.
    assert not np.allclose(noise[0], noise[1])

    print("KERNEL_OK")
</pallas_src>

<mosaic_0001>
module attributes {stable_mosaic.version = 11 : i64} {
  func.func @_gaussian_noise_kernel(%arg0: i32, %arg1: i32, %arg2: memref<2xi32, #tpu.memory_space<smem>>, %arg3: memref<1xi32, #tpu.memory_space<smem>>, %arg4: memref<1x8x128xf32, #tpu.memory_space<vmem>>, %arg5: memref<1x8x128xf32, #tpu.memory_space<vmem>>) attributes {dimension_semantics = [#tpu.dimension_semantics<parallel>, #tpu.dimension_semantics<parallel>], iteration_bounds = array<i64: 2, 1>, scalar_prefetch = 2 : i64, scratch_operands = 0 : i64, tpu.core_type = #tpu.core_type<tc>, window_params = [{transform_indices = @transform_0, window_bounds = array<i64: 1, 8, 128>}, {transform_indices = @transform_1, window_bounds = array<i64: 1, 8, 128>}]} {
    %0 = tpu.iota {dimensions = array<i32: 0>} : vector<8x128xi32>
    %1 = tpu.iota {dimensions = array<i32: 1>} : vector<8x128xi32>
    %c1_i32 = arith.constant 1 : i32
    %2 = arith.muli %arg0, %c1_i32 : i32
    %3 = arith.addi %2, %arg1 : i32
    %c1024_i32 = arith.constant 1024 : i32
    %4 = arith.muli %3, %c1024_i32 : i32
    %c128_i32 = arith.constant 128 : i32
    %5 = vector.broadcast %c128_i32 : i32 to vector<8x128xi32>
    %6 = arith.muli %0, %5 : vector<8x128xi32>
    %7 = vector.broadcast %4 : i32 to vector<8x128xi32>
    %8 = arith.addi %7, %6 : vector<8x128xi32>
    %9 = arith.addi %8, %1 : vector<8x128xi32>
    %c0 = arith.constant 0 : index
    %10 = memref.load %arg3[%c0] : memref<1xi32, #tpu.memory_space<smem>>
    %c-1640531527_i32 = arith.constant -1640531527 : i32
    %11 = vector.broadcast %c-1640531527_i32 : i32 to vector<8x128xi32>
    %12 = arith.muli %9, %11 : vector<8x128xi32>
    %c-1028477387_i32 = arith.constant -1028477387 : i32
    %13 = arith.muli %10, %c-1028477387_i32 : i32
    %c-1640531527_i32_0 = arith.constant -1640531527 : i32
    %14 = arith.addi %13, %c-1640531527_i32_0 : i32
    %15 = vector.broadcast %14 : i32 to vector<8x128xi32>
    %16 = arith.xori %12, %15 : vector<8x128xi32>
    %c16_i32 = arith.constant 16 : i32
    %17 = vector.broadcast %c16_i32 : i32 to vector<8x128xi32>
    %18 = arith.shrsi %16, %17 : vector<8x128xi32>
    %c65535_i32 = arith.constant 65535 : i32
    %19 = vector.broadcast %c65535_i32 : i32 to vector<8x128xi32>
    %20 = arith.andi %18, %19 : vector<8x128xi32>
    %21 = arith.xori %16, %20 : vector<8x128xi32>
    %c-2048144789_i32 = arith.constant -2048144789 : i32
    %22 = vector.broadcast %c-2048144789_i32 : i32 to vector<8x128xi32>
    %23 = arith.muli %21, %22 : vector<8x128xi32>
    %c13_i32 = arith.constant 13 : i32
    %24 = vector.broadcast %c13_i32 : i32 to vector<8x128xi32>
    %25 = arith.shrsi %23, %24 : vector<8x128xi32>
    %c524287_i32 = arith.constant 524287 : i32
    %26 = vector.broadcast %c524287_i32 : i32 to vector<8x128xi32>
    %27 = arith.andi %25, %26 : vector<8x128xi32>
    %28 = arith.xori %23, %27 : vector<8x128xi32>
    %c-1028477387_i32_1 = arith.constant -1028477387 : i32
    %29 = vector.broadcast %c-1028477387_i32_1 : i32 to vector<8x128xi32>
    %30 = arith.muli %28, %29 : vector<8x128xi32>
    %c16_i32_2 = arith.constant 16 : i32
    %31 = vector.broadcast %c16_i32_2 : i32 to vector<8x128xi32>
    %32 = arith.shrsi %30, %31 : vector<8x128xi32>
    %c65535_i32_3 = arith.constant 65535 : i32
    %33 = vector.broadcast %c65535_i32_3 : i32 to vector<8x128xi32>
    %34 = arith.andi %32, %33 : vector<8x128xi32>
    %35 = arith.xori %30, %34 : vector<8x128xi32>
    %c9_i32 = arith.constant 9 : i32
    %36 = vector.broadcast %c9_i32 : i32 to vector<8x128xi32>
    %37 = arith.shrsi %35, %36 : vector<8x128xi32>
    %c8388607_i32 = arith.constant 8388607 : i32
    %38 = vector.broadcast %c8388607_i32 : i32 to vector<8x128xi32>
    %39 = arith.andi %37, %38 : vector<8x128xi32>
    %40 = arith.sitofp %39 : vector<8x128xi32> to vector<8x128xf32>
    %cst = arith.constant 1.1920929E-7 : f32
    %41 = vector.broadcast %cst : f32 to vector<8x128xf32>
    %42 = arith.mulf %40, %41 : vector<8x128xf32>
    %cst_4 = arith.constant 5.96046448E-8 : f32
    %43 = vector.broadcast %cst_4 : f32 to vector<8x128xf32>
    %44 = arith.addf %42, %43 : vector<8x128xf32>
    %cst_5 = arith.constant 5.000000e-01 : f32
    %45 = vector.broadcast %cst_5 : f32 to vector<8x128xf32>
    %46 = arith.subf %44, %45 : vector<8x128xf32>
    %47 = arith.mulf %46, %46 : vector<8x128xf32>
    %cst_6 = arith.constant -39.6968307 : f32
    %48 = vector.broadcast %cst_6 : f32 to vector<8x128xf32>
    %49 = arith.mulf %48, %47 : vector<8x128xf32>
    %cst_7 = arith.constant 220.946106 : f32
    %50 = vector.broadcast %cst_7 : f32 to vector<8x128xf32>
    %51 = arith.addf %49, %50 : vector<8x128xf32>
    %52 = arith.mulf %51, %47 : vector<8x128xf32>
    %cst_8 = arith.constant -275.928497 : f32
    %53 = vector.broadcast %cst_8 : f32 to vector<8x128xf32>
    %54 = arith.addf %52, %53 : vector<8x128xf32>
    %55 = arith.mulf %54, %47 : vector<8x128xf32>
    %cst_9 = arith.constant 138.357758 : f32
    %56 = vector.broadcast %cst_9 : f32 to vector<8x128xf32>
    %57 = arith.addf %55, %56 : vector<8x128xf32>
    %58 = arith.mulf %57, %47 : vector<8x128xf32>
    %cst_10 = arith.constant -30.6647987 : f32
    %59 = vector.broadcast %cst_10 : f32 to vector<8x128xf32>
    %60 = arith.addf %58, %59 : vector<8x128xf32>
    %61 = arith.mulf %60, %47 : vector<8x128xf32>
    %cst_11 = arith.constant 2.50662827 : f32
    %62 = vector.broadcast %cst_11 : f32 to vector<8x128xf32>
    %63 = arith.addf %61, %62 : vector<8x128xf32>
    %64 = arith.mulf %63, %46 : vector<8x128xf32>
    %cst_12 = arith.constant -54.4760971 : f32
    %65 = vector.broadcast %cst_12 : f32 to vector<8x128xf32>
    %66 = arith.mulf %65, %47 : vector<8x128xf32>
    %cst_13 = arith.constant 161.585831 : f32
    %67 = vector.broadcast %cst_13 : f32 to vector<8x128xf32>
    %68 = arith.addf %66, %67 : vector<8x128xf32>
    %69 = arith.mulf %68, %47 : vector<8x128xf32>
    %cst_14 = arith.constant -155.698975 : f32
    %70 = vector.broadcast %cst_14 : f32 to vector<8x128xf32>
    %71 = arith.addf %69, %70 : vector<8x128xf32>
    %72 = arith.mulf %71, %47 : vector<8x128xf32>
    %cst_15 = arith.constant 66.8013153 : f32
    %73 = vector.broadcast %cst_15 : f32 to vector<8x128xf32>
    %74 = arith.addf %72, %73 : vector<8x128xf32>
    %75 = arith.mulf %74, %47 : vector<8x128xf32>
    %cst_16 = arith.constant -13.2806816 : f32
    %76 = vector.broadcast %cst_16 : f32 to vector<8x128xf32>
    %77 = arith.addf %75, %76 : vector<8x128xf32>
    %78 = arith.mulf %77, %47 : vector<8x128xf32>
    %cst_17 = arith.constant 1.000000e+00 : f32
    %79 = vector.broadcast %cst_17 : f32 to vector<8x128xf32>
    %80 = arith.addf %78, %79 : vector<8x128xf32>
    %cst_18 = arith.constant 1.000000e+00 : f32
    %81 = vector.broadcast %cst_18 : f32 to vector<8x128xf32>
    %82 = arith.subf %81, %44 : vector<8x128xf32>
    %83 = arith.minimumf %44, %82 : vector<8x128xf32>
    %84 = math.log %83 : vector<8x128xf32>
    %cst_19 = arith.constant -2.000000e+00 : f32
    %85 = vector.broadcast %cst_19 : f32 to vector<8x128xf32>
    %86 = arith.mulf %85, %84 : vector<8x128xf32>
    %87 = math.sqrt %86 : vector<8x128xf32>
    %cst_20 = arith.constant -0.0077848942 : f32
    %88 = vector.broadcast %cst_20 : f32 to vector<8x128xf32>
    %89 = arith.mulf %88, %87 : vector<8x128xf32>
    %cst_21 = arith.constant -0.322396457 : f32
    %90 = vector.broadcast %cst_21 : f32 to vector<8x128xf32>
    %91 = arith.addf %89, %90 : vector<8x128xf32>
    %92 = arith.mulf %91, %87 : vector<8x128xf32>
    %cst_22 = arith.constant -2.40075827 : f32
    %93 = vector.broadcast %cst_22 : f32 to vector<8x128xf32>
    %94 = arith.addf %92, %93 : vector<8x128xf32>
    %95 = arith.mulf %94, %87 : vector<8x128xf32>
    %cst_23 = arith.constant -2.54973245 : f32
    %96 = vector.broadcast %cst_23 : f32 to vector<8x128xf32>
    %97 = arith.addf %95, %96 : vector<8x128xf32>
    %98 = arith.mulf %97, %87 : vector<8x128xf32>
    %cst_24 = arith.constant 4.37466431 : f32
    %99 = vector.broadcast %cst_24 : f32 to vector<8x128xf32>
    %100 = arith.addf %98, %99 : vector<8x128xf32>
    %101 = arith.mulf %100, %87 : vector<8x128xf32>
    %cst_25 = arith.constant 2.938164 : f32
    %102 = vector.broadcast %cst_25 : f32 to vector<8x128xf32>
    %103 = arith.addf %101, %102 : vector<8x128xf32>
    %cst_26 = arith.constant 0.00778469583 : f32
    %104 = vector.broadcast %cst_26 : f32 to vector<8x128xf32>
    %105 = arith.mulf %104, %87 : vector<8x128xf32>
    %cst_27 = arith.constant 0.322467119 : f32
    %106 = vector.broadcast %cst_27 : f32 to vector<8x128xf32>
    %107 = arith.addf %105, %106 : vector<8x128xf32>
    %108 = arith.mulf %107, %87 : vector<8x128xf32>
    %cst_28 = arith.constant 2.44513416 : f32
    %109 = vector.broadcast %cst_28 : f32 to vector<8x128xf32>
    %110 = arith.addf %108, %109 : vector<8x128xf32>
    %111 = arith.mulf %110, %87 : vector<8x128xf32>
    %cst_29 = arith.constant 3.7544086 : f32
    %112 = vector.broadcast %cst_29 : f32 to vector<8x128xf32>
    %113 = arith.addf %111, %112 : vector<8x128xf32>
    %114 = arith.mulf %113, %87 : vector<8x128xf32>
    %cst_30 = arith.constant 1.000000e+00 : f32
    %115 = vector.broadcast %cst_30 : f32 to vector<8x128xf32>
    %116 = arith.addf %114, %115 : vector<8x128xf32>
    %cst_31 = arith.constant 0.000000e+00 : f32
    %117 = vector.broadcast %cst_31 : f32 to vector<8x128xf32>
    %118 = arith.cmpf ogt, %46, %117 : vector<8x128xf32>
    %cst_32 = arith.constant 0.000000e+00 : f32
    %119 = vector.broadcast %cst_32 : f32 to vector<8x128xf32>
    %120 = arith.subf %119, %103 : vector<8x128xf32>
    %121 = arith.select %118, %120, %103 : vector<8x128xi1>, vector<8x128xf32>
    %122 = math.absf %46 : vector<8x128xf32>
    %cst_33 = arith.constant 4.757500e-01 : f32
    %123 = vector.broadcast %cst_33 : f32 to vector<8x128xf32>
    %124 = arith.cmpf ole, %122, %123 : vector<8x128xf32>
    %125 = arith.select %124, %64, %121 : vector<8x128xi1>, vector<8x128xf32>
    %126 = arith.select %124, %80, %116 : vector<8x128xi1>, vector<8x128xf32>
    %127 = arith.divf %125, %126 : vector<8x128xf32>
    %cst_34 = arith.constant 5.000000e-02 : f32
    %128 = vector.broadcast %cst_34 : f32 to vector<8x128xf32>
    %129 = arith.mulf %128, %127 : vector<8x128xf32>
    %c0_35 = arith.constant 0 : index
    %c0_36 = arith.constant 0 : index
    %c0_37 = arith.constant 0 : index
    %130 = vector.load %arg4[%c0_35, %c0_36, %c0_37] : memref<1x8x128xf32, #tpu.memory_space<vmem>>, vector<1x8x128xf32>
    %131 = vector.shape_cast %130 : vector<1x8x128xf32> to vector<8x128xf32>
    %132 = arith.addf %131, %129 : vector<8x128xf32>
    %133 = arith.index_cast %arg0 : i32 to index
    %134 = memref.load %arg2[%133] : memref<2xi32, #tpu.memory_space<smem>>
    %c0_i32 = arith.constant 0 : i32
    %135 = arith.cmpi sgt, %134, %c0_i32 : i32
    %cst_38 = arith.constant -1.000000e+00 : f32
    %cst_39 = arith.constant 0.000000e+00 : f32
    %136 = arith.select %135, %cst_38, %cst_39 : f32
    %137 = vector.broadcast %136 : f32 to vector<8x128xf32>
    %138 = arith.maximumf %132, %137 : vector<8x128xf32>
    %cst_40 = arith.constant 1.000000e+00 : f32
    %139 = vector.broadcast %cst_40 : f32 to vector<8x128xf32>
    %140 = arith.minimumf %138, %139 : vector<8x128xf32>
    %c0_41 = arith.constant 0 : index
    %c0_42 = arith.constant 0 : index
    %c0_43 = arith.constant 0 : index
    %141 = vector.load %arg5[%c0_41, %c0_42, %c0_43] : memref<1x8x128xf32, #tpu.memory_space<vmem>>, vector<1x8x128xf32>
    %142 = vector.shape_cast %141 : vector<1x8x128xf32> to vector<8x128xf32>
    %143 = vector.shape_cast %140 : vector<8x128xf32> to vector<1x8x128xf32>
    tpu.vector_store %arg5[%c0_41, %c0_42, %c0_43], %143 {strides = array<i32>} : memref<1x8x128xf32, #tpu.memory_space<vmem>>, vector<1x8x128xf32>,
    return
  }
  func.func @transform_0(%arg0: i32, %arg1: i32, %arg2: memref<2xi32, #tpu.memory_space<smem>>, %arg3: memref<1xi32, #tpu.memory_space<smem>>) -> (i32, i32, i32) {
    %c0_i32 = arith.constant 0 : i32
    %c0_i32_0 = arith.constant 0 : i32
    return %arg0, %arg1, %c0_i32 : i32, i32, i32
  }
  func.func @transform_1(%arg0: i32, %arg1: i32, %arg2: memref<2xi32, #tpu.memory_space<smem>>, %arg3: memref<1xi32, #tpu.memory_space<smem>>) -> (i32, i32, i32) {
    %c0_i32 = arith.constant 0 : i32
    %c0_i32_0 = arith.constant 0 : i32
    return %arg0, %arg1, %c0_i32 : i32, i32, i32
  }
}

</mosaic_0001>

<llo_original>
// kernel: tpu_custom_call.1
$region0: #{tpu_custom_call.1}
  #allocation0 [shape = 'u32[]', space=smem, size = 0x4, offset = 0x4, fixed_abs, tag = 'smem constant byte address 0x4 - core index']
  #allocation1 [shape = 'u32[144,128]{1,0:T(1,128)}', space=vmem, size = 0x12000, scoped, tag = 'internal scratch']
  #allocation2 [shape = 's32[1]{0}', space=sflag, size = 0x4, scoped, tag = 'scoped memory for tpu_custom_call.1']
  #allocation3 [shape = 'u8[512]{0}', space=smem, size = 0x200, scoped, tag = 'prefetched SMEM operand 0']
  #allocation4 [shape = 's32[1]{0:T(128)S(6)}', space=smem, size = 0x200, scoped, tag = 'prefetched SMEM operand 1']
  %s0 = inlined_call_operand.vmem [shape: s32[2], index: 0, kind: input, shape index: {}]
  %s1 = inlined_call_operand.<no memory space> [shape: s32[1], index: 1, kind: input, shape index: {}]
  %s2 = inlined_call_operand.hbm [shape: f32[2,8,128], index: 2, kind: input, shape index: {}, may-alias: {2,3}]
  %s3 = inlined_call_operand.hbm [shape: f32[2,8,128], index: 3, kind: output, shape index: {}, may-alias: {2,3}]
  %s4 = sld [smem:[#allocation0]]
  $region41: #{tpu_custom_call.1} parent=0
    _
  %s6 = ssub.s32 1, %s4
  %s7 = scalar_select 0, %s6, %s4
  %s8 = sshll.u32 %s0, 4
  %s9 = int_to_ptr.vmem [resolvable:$true] %s8
  %11 = dma.vmem_to_smem %s9, 16, [#allocation3], [#allocation2]
  %12 = sst [smem:[#allocation4]] %s1
  %13 = dma.done [#allocation2], 16
  %14 = sfence
  $region1: #{tpu_custom_call.1} parent=0
    #allocation5 [shape = 'u8[8192]{0}', space=vmem, size = 0x2000, scoped, tag = 'input window, operand 2']
    #allocation6 [shape = 's32[2]{0}', space=sflag, size = 0x8, scoped, tag = 'scoped memory for tpu_custom_call.1']
    #allocation7 [shape = 's32[2]{0}', space=sflag, size = 0x8, scoped, tag = 'scoped memory for tpu_custom_call.1']
    #allocation8 [shape = 'u8[8192]{0}', space=vmem, size = 0x2000, scoped, tag = 'output window, operand 0']
    %15 = vsyncpa [#allocation6], 0
    %s16 = scalar_lea.sflag [#allocation6], 1
    %17 = vsyncpa %s16, 0
    %18 = vsyncpa [#allocation7], 0
    %s19 = scalar_lea.sflag [#allocation7], 1
    %20 = vsyncpa %s19, 0
    loop: start=0, step=1, limit=4
    $region2: #{tpu_custom_call.1} parent=1 // loop_pre_header
      _
    $region3: #{tpu_custom_call.1} parent=1 // loop_header
      %s22 = sphi 0, %s26
      %p23 = scmp.ge.s32.totalorder %s22, 4
      %s29 = sphi 0, %s41
      %s30 = sphi 0, %s37
      %s31 = sphi 0, %s29
      %s32 = sphi 0, %s30
      %s33 = sphi 0, %s31
      %s34 = sphi 0, %s32
      %s46 = sphi 0, %s48
      %s49 = sphi 0, %s46
      %s50 = sphi 0, %s49
      %s66 = sphi 0, %s50
      %s74 = sphi 0, %s76
      %s77 = sphi 0, %s74
      %s78 = sphi 0, %s77
      %s94 = sphi 0, %s78
    $region4: #{tpu_custom_call.1} parent=1 // loop_header_branch
      %25 = sbr.rel (%p23) target = $region8
    $region5: #{tpu_custom_call.1} parent=1 // loop_body
      %s27 = ssub.s32 %s22, 1
      %s28 = ssub.s32 %s22, 2
      %s35 = sadd.s32 1, %s30
      %p36 = scmp.ge.s32.totalorder %s35, 1
      %s37 = scalar_select %p36, 0, %s35
      %s38 = sadd.s32 1, %s29
      %s39 = scalar_select %p36, %s38, %s29
      %p40 = scmp.ge.s32.totalorder %s39, 2
      %s41 = scalar_select %p40, 0, %s39
      %s42 = ssub.s32 %s29, %s41
      %s43 = ssub.s32 %s30, %s37
      %s44 = sor.u32 %s42, %s43
      %p45 = scmp.eq.s32.totalorder %s44, 0
      %s47 = sadd.s32 %s46, 1
      %s48 = scalar_select %p45, %s46, %s47
      %p51 = pneg %p45
      %p52 = scmp.eq.s32.totalorder %s22, 1
      %p53 = por %p51, %p52
      %p54 = scmp.ne.s32.totalorder %s46, %s49
      %p55 = scmp.eq.s32.totalorder %s22, 0
      %p56 = por %p54, %p55
      %p57 = scmp.ne.s32.totalorder %s46, %s49
      %p58 = scmp.eq.s32.totalorder %s27, 1
      %p59 = por %p57, %p58
      %p60 = scmp.ne.s32.totalorder %s49, %s50
      %p61 = scmp.eq.s32.totalorder %s27, 0
      %p62 = por %p60, %p61
      %p63 = scmp.ne.s32.totalorder %s49, %s50
      %p64 = scmp.eq.s32.totalorder %s28, 1
      %p65 = por %p63, %p64
      %p67 = scmp.ne.s32.totalorder %s50, %s66
      %p68 = scmp.eq.s32.totalorder %s28, 0
      %p69 = por %p67, %p68
      %s70 = ssub.s32 %s29, %s41
      %s71 = ssub.s32 %s30, %s37
      %s72 = sor.u32 %s70, %s71
      %p73 = scmp.eq.s32.totalorder %s72, 0
      %s75 = sadd.s32 %s74, 1
      %s76 = scalar_select %p73, %s74, %s75
      %p79 = pneg %p73
      %p80 = scmp.eq.s32.totalorder %s22, 1
      %p81 = por %p79, %p80
      %p82 = scmp.ne.s32.totalorder %s74, %s77
      %p83 = scmp.eq.s32.totalorder %s22, 0
      %p84 = por %p82, %p83
      %p85 = scmp.ne.s32.totalorder %s74, %s77
      %p86 = scmp.eq.s32.totalorder %s27, 1
      %p87 = por %p85, %p86
      %p88 = scmp.ne.s32.totalorder %s77, %s78
      %p89 = scmp.eq.s32.totalorder %s27, 0
      %p90 = por %p88, %p89
      %p91 = scmp.ne.s32.totalorder %s77, %s78
      %p92 = scmp.eq.s32.totalorder %s28, 1
      %p93 = por %p91, %p92
      %p95 = scmp.ne.s32.totalorder %s78, %s94
      %p96 = scmp.eq.s32.totalorder %s28, 0
      %p97 = por %p95, %p96
      %p98 = scmp.le.s32.totalorder 1, %s22
      %p99 = scmp.lt.s32.totalorder %s22, 3
      %p100 = pnand %p98, %p99
      %p101 = pneg %p100
      // Predicated region
      $region9: #{tpu_custom_call.1} parent=5 // pred_check
        _
      $region10: #{tpu_custom_call.1} parent=5 // pred_check_branch
        %103 = sbr.rel (%p100) target = $region12
      $region11: #{tpu_custom_call.1} parent=5 // pred_region
        %s104 = ssub.s32 %s22, 1
      $region12: #{tpu_custom_call.1} parent=5 // pred_fallthru
        _
      %p105 = scmp.lt.s32.totalorder %s22, 2
      // Predicated region
      $region13: #{tpu_custom_call.1} parent=5 // pred_check
        %p106 = pneg %p105
      $region14: #{tpu_custom_call.1} parent=5 // pred_check_branch
        %108 = sbr.rel (%p106) target = $region16
      $region15: #{tpu_custom_call.1} parent=5 // pred_region
        // Predicated region
        $region17: #{tpu_custom_call.1} parent=15 // pred_check
          %p109 = pneg %p56
        $region18: #{tpu_custom_call.1} parent=15 // pred_check_branch
          %111 = sbr.rel (%p109) target = $region20
        $region19: #{tpu_custom_call.1} parent=15 // pred_region
          %s112 = sand.u32 %s46, 1
          %s113 = scalar_lea.sflag [#allocation6], %s112
          %s114 = sand.u32 %s46, 1
          %s115 = smul.addr %s114, 8
          %s116 = scalar_lea.vmem [#allocation5], %s115
          %s118 = ssub.s32 128, 128
          %119 = vsyncadd %s113, %s118
          %s120 = sadd.s32 %s30, %s29
          %s121 = smul.addr %s120, 128
          %s122 = scalar_lea.hbm %s2, %s121
          %s124 = sshll.u32 %s116, 4
          %s125 = int_to_ptr.vmem [resolvable:$true] %s124
          %127 = dma.hbm_to_vmem [thread:$0]  %s122, 128, %s125, %s113
        $region20: #{tpu_custom_call.1} parent=15 // pred_fallthru
          _
      $region16: #{tpu_custom_call.1} parent=5 // pred_fallthru
        _
      %p128 = scmp.le.s32.totalorder 1, %s22
      %p129 = scmp.lt.s32.totalorder %s22, 3
      %p130 = pnand %p128, %p129
      %p131 = pneg %p130
      // Predicated region
      $region21: #{tpu_custom_call.1} parent=5 // pred_check
        _
      $region22: #{tpu_custom_call.1} parent=5 // pred_check_branch
        %133 = sbr.rel (%p130) target = $region24
      $region23: #{tpu_custom_call.1} parent=5 // pred_region
        %s134 = ssub.s32 %s22, 1
        %s135 = sand.u32 %s49, 1
        %s136 = scalar_lea.sflag [#allocation6], %s135
        %s137 = sand.u32 %s49, 1
        %s138 = smul.addr %s137, 8
        %s139 = scalar_lea.vmem [#allocation5], %s138
        // Predicated region
        $region25: #{tpu_custom_call.1} parent=23 // pred_check
          %p140 = pneg %p62
        $region26: #{tpu_custom_call.1} parent=23 // pred_check_branch
          %142 = sbr.rel (%p140) target = $region28
        $region27: #{tpu_custom_call.1} parent=23 // pred_region
          %143 = dma.done %s136, 128
        $region28: #{tpu_custom_call.1} parent=23 // pred_fallthru
          _
        %s144 = sand.u32 %s49, 1
        %s145 = scalar_lea.sflag [#allocation6], %s144
        %s146 = sand.u32 %s49, 1
        %s147 = smul.addr %s146, 8
        %s148 = scalar_lea.vmem [#allocation5], %s147
        %p149 = pneg %p62
        %p150 = pneg %p59
        %p151 = pneg %p90
        %p152 = pneg %p87
        %s153 = sand.u32 %s77, 1
        %s154 = scalar_lea.sflag [#allocation7], %s153
        %s155 = sand.u32 %s77, 1
        %s156 = smul.addr %s155, 8
        %s157 = scalar_lea.vmem [#allocation8], %s156
        %v158 = vlaneseq
        %v159 = vshrl.u32 %v158, 7
        %v160 = vlaneseq
        %v161 = vand.u32 %v160, 127
        %s162 = sadd.s32 %s31, %s32
        %s163 = smul.u32 %s162, 1024
        %v164 = vmul.u32 %v159, 128
        %v165 = vstv %s163
        %v166 = vadd.s32 %v165, %v164
        %v167 = vadd.s32 %v166, %v161
        %s168 = sld [smem:[#allocation4]]
        %v169 = vmul.u32 %v167, 2654435769
        %s170 = smul.u32 %s168, 3266489909
        %s171 = sadd.s32 %s170, 2654435769
        %v172 = vstv %s171
        %v173 = vxor.u32 %v169, %v172
        %v174 = vshra.s32 %v173, 16
        %v175 = vand.u32 %v174, 65535
        %v176 = vxor.u32 %v173, %v175
        %v177 = vmul.u32 %v176, 2246822507
        %v178 = vshra.s32 %v177, 13
        %v179 = vand.u32 %v178, 524287
        %v180 = vxor.u32 %v177, %v179
        %v181 = vmul.u32 %v180, 3266489909
        %v182 = vshra.s32 %v181, 16
        %v183 = vand.u32 %v182, 65535
        %v184 = vxor.u32 %v181, %v183
        %v185 = vshra.s32 %v184, 9
        %v186 = vand.u32 %v185, 8388607
        %v187 = vcvt.s32.f32 %v186
        %v188 = vmul.f32 %v187, 1.1920929e-07
        %v189 = vadd.f32 %v188, 5.9604645e-08
        %v190 = vsub.f32 %v189, 0.5
        %v191 = vmul.f32 %v190, %v190
        %v192 = vmul.f32 %v191, -39.69683
        %v193 = vadd.f32 %v192, 220.9461
        %v194 = vmul.f32 %v193, %v191
        %v195 = vadd.f32 %v194, -275.9285
        %v196 = vmul.f32 %v195, %v191
        %v197 = vadd.f32 %v196, 138.35776
        %v198 = vmul.f32 %v197, %v191
        %v199 = vadd.f32 %v198, -30.664799
        %v200 = vmul.f32 %v199, %v191
        %v201 = vadd.f32 %v200, 2.5066283
        %v202 = vmul.f32 %v201, %v190
        %v203 = vmul.f32 %v191, -54.476097
        %v204 = vadd.f32 %v203, 161.58583
        %v205 = vmul.f32 %v204, %v191
        %v206 = vadd.f32 %v205, -155.69897
        %v207 = vmul.f32 %v206, %v191
        %v208 = vadd.f32 %v207, 66.801315
        %v209 = vmul.f32 %v208, %v191
        %v210 = vadd.f32 %v209, -13.280682
        %v211 = vmul.f32 %v210, %v191
        %v212 = vadd.f32 %v211, 1.0
        %v213 = vsub.f32 1.0, %v189
        %v214 = vmin.f32 %v189, %v213
        %v215 = vlog2.pop %v214
        %v216 = vmul.f32 %v215, 0.6931472
        %v217 = vmul.f32 %v216, -2.0
        %v218 = vrsqrt.pop %v217
        %v219 = vmul.f32 %v217, %v218
        %vm220 = vcmp.eq.f32.partialorder %v217, inf
        %v221 = vsel %vm220, %v217, %v219
        %vm222 = vcmp.eq.f32.partialorder %v217, 0.0
        %v223 = vand.u32 %v217, 2147483648
        %v224 = vsel %vm222, %v223, %v221
        %v225 = vmul.f32 %v224, -0.007784894
        %v226 = vadd.f32 %v225, -0.32239646
        %v227 = vmul.f32 %v226, %v224
        %v228 = vadd.f32 %v227, -2.4007583
        %v229 = vmul.f32 %v228, %v224
        %v230 = vadd.f32 %v229, -2.5497324
        %v231 = vmul.f32 %v230, %v224
        %v232 = vadd.f32 %v231, 4.3746643
        %v233 = vmul.f32 %v232, %v224
        %v234 = vadd.f32 %v233, 2.938164
        %v235 = vmul.f32 %v224, 0.007784696
        %v236 = vadd.f32 %v235, 0.32246712
        %v237 = vmul.f32 %v236, %v224
        %v238 = vadd.f32 %v237, 2.4451342
        %v239 = vmul.f32 %v238, %v224
        %v240 = vadd.f32 %v239, 3.7544086
        %v241 = vmul.f32 %v240, %v224
        %v242 = vadd.f32 %v241, 1.0
        %vm243 = vcmp.gt.f32.partialorder %v190, 0.0
        %v244 = vsub.f32 0.0, %v234
        %v245 = vsel %vm243, %v244, %v234
        %v246 = vand.u32 2147483647, %v190
        %vm247 = vcmp.le.f32.partialorder %v246, 0.47575
        %v248 = vsel %vm247, %v202, %v245
        %v249 = vsel %vm247, %v212, %v242
        %v250 = vrcp.pop %v249
        %v251 = vmul.f32 %v248, %v250
        %v252 = vmul.f32 %v251, 0.05
        %v253 = vld [vmem:[%s139] sm:$0xff]
        %v254 = vadd.f32 %v253, %v252
        %s255 = sld [smem:[#allocation3 + %s31]]
        %p256 = scmp.gt.s32.totalorder %s255, 0
        %s257 = scalar_select %p256, -1.0, 0.0
        %v258 = vstv %s257
        %v259 = vmax.f32 %v254, %v258
        %v260 = vmin.f32 %v259, 1.0
        %261 = vst [vmem:[%s157] sm:$0xff] %v260
        %s262 = sand.u32 %s77, 1
        %s263 = scalar_lea.sflag [#allocation7], %s262
        %s264 = sand.u32 %s77, 1
        %s265 = smul.addr %s264, 8
        %s266 = scalar_lea.vmem [#allocation8], %s265
        // Predicated region
        $region29: #{tpu_custom_call.1} parent=23 // pred_check
          %p267 = pneg %p87
        $region30: #{tpu_custom_call.1} parent=23 // pred_check_branch
          %269 = sbr.rel (%p267) target = $region32
        $region31: #{tpu_custom_call.1} parent=23 // pred_region
          %s271 = ssub.s32 128, 128
          %272 = vsyncadd %s263, %s271
          %s273 = sadd.s32 %s32, %s31
          %s274 = smul.addr %s273, 128
          %s275 = scalar_lea.hbm %s3, %s274
          %s277 = sshll.u32 %s266, 4
          %s278 = int_to_ptr.vmem [resolvable:$true] %s277
          %280 = dma.vmem_to_hbm [thread:$0]  %s278, 128, %s275, %s263
        $region32: #{tpu_custom_call.1} parent=23 // pred_fallthru
          _
      $region24: #{tpu_custom_call.1} parent=5 // pred_fallthru
        _
      %p281 = scmp.le.s32.totalorder 2, %s22
      // Predicated region
      $region33: #{tpu_custom_call.1} parent=5 // pred_check
        %p282 = pneg %p281
      $region34: #{tpu_custom_call.1} parent=5 // pred_check_branch
        %284 = sbr.rel (%p282) target = $region36
      $region35: #{tpu_custom_call.1} parent=5 // pred_region
        %s285 = ssub.s32 %s22, 2
        // Predicated region
        $region37: #{tpu_custom_call.1} parent=35 // pred_check
          %p286 = pneg %p93
        $region38: #{tpu_custom_call.1} parent=35 // pred_check_branch
          %288 = sbr.rel (%p286) target = $region40
        $region39: #{tpu_custom_call.1} parent=35 // pred_region
          %s289 = sand.u32 %s78, 1
          %s290 = scalar_lea.sflag [#allocation7], %s289
          %s291 = sand.u32 %s78, 1
          %s292 = smul.addr %s291, 8
          %s293 = scalar_lea.vmem [#allocation8], %s292
          %294 = dma.done %s290, 128
        $region40: #{tpu_custom_call.1} parent=35 // pred_fallthru
          _
      $region36: #{tpu_custom_call.1} parent=5 // pred_fallthru
        _
    $region6: #{tpu_custom_call.1} parent=1 // loop_footer
      %s26 = sadd.s32 1, %s22
    $region7: #{tpu_custom_call.1} parent=1 // loop_footer_branch
      %21 = sbr.rel target = $region3
    $region8: #{tpu_custom_call.1} parent=1 // loop_exit
      _
    %295 = vsyncpa [#allocation6], 1
    %s296 = scalar_lea.sflag [#allocation6], 1
    %297 = vsyncpa %s296, 1
    %298 = vsyncpa [#allocation7], 1
    %s299 = scalar_lea.sflag [#allocation7], 1
    %300 = vsyncpa %s299, 1

</llo_original>
